<compile_context>
chip_gen: v5e
topology: v5e:2x2
jax: 0.10.0
libtpu: 0.0.40
codegen_flags: <defaults>
</compile_context>

<pallas_src>
import functools

import jax
import jax.numpy as jnp
from jax.experimental import pallas as pl
from jax.experimental.pallas import tpu as pltpu

K = 7      # conv kernel size
PAD = 3    # conv padding (kernel_size=7, stride=1, padding=3, bias=False)


def basic_block_kernel(x_ref, w1_ref, s1_ref, b1_ref, w2_ref, s2_ref, b2_ref,
                       o_ref, stage_ref, im1_ref, im2_ref,
                       *, L, LP, CS, cdtype):
    # x_ref  : (NB, Cin, L)       raw (un-padded) input block, f32
    # w1_ref : (planes, K*CS)     flattened conv1 weight, column = k*CS + c
    # w2_ref : (planes, K*CS)     flattened conv2 weight
    # s*,b*  : (planes, 1)        folded BatchNorm scale / bias, f32
    # o_ref  : (NB, planes, L)    un-padded output block, f32
    # stage  : (CS, LP + 2*PAD)   f32 staging slab (conv pad + length pad)
    # im1/2  : (K*CS, NB*LP)      im2col slabs in the MXU compute dtype
    NB, planes, _ = o_ref.shape
    Cin = x_ref.shape[1]
    W = LP + 2 * PAD
    f32 = jnp.float32

    # Re-zero the staging pad regions every step.  They are never touched by the
    # per-sample interior stores below, and re-zeroing (instead of a step-0 init)
    # keeps the kernel correct when the grid is split across TensorCores.
    stage_ref[:, 0:PAD] = jnp.zeros((CS, PAD), f32)
    stage_ref[:, PAD + L:W] = jnp.zeros((CS, W - PAD - L), f32)
    if CS > Cin:
        stage_ref[Cin:CS, PAD:PAD + L] = jnp.zeros((CS - Cin, L), f32)

    def write_taps(im_ref, nb):
        # One load of the staged slab, then 7 lane-shifted slices -> aligned
        # full-tile stores into the im2col slab (rows k*CS are 8/16-aligned).
        src = stage_ref[...]                                   # (CS, W) f32
        for k in range(K):
            v = src[:, k:k + LP]                               # shift = k - PAD
            im_ref[k * CS:(k + 1) * CS, nb * LP:(nb + 1) * LP] = v.astype(cdtype)

    # ---- conv1: build im2col slab, one MXU contraction over K*CS ----------
    for nb in range(NB):
        stage_ref[0:Cin, PAD:PAD + L] = x_ref[nb]
        write_taps(im1_ref, nb)

    acc1 = jnp.dot(w1_ref[...], im1_ref[...],
                   preferred_element_type=f32)                 # (planes, NB*LP)

    # ---- BN1 (folded affine) + ReLU; Dropout(0.2) is identity in eval -----
    h = jnp.maximum(acc1 * s1_ref[...] + b1_ref[...], 0.0)

    # ---- conv2: restage h (only its L real columns -> proper zero padding) -
    for nb in range(NB):
        stage_ref[0:planes, PAD:PAD + L] = h[:, nb * LP:nb * LP + L]
        write_taps(im2_ref, nb)

    acc2 = jnp.dot(w2_ref[...], im2_ref[...],
                   preferred_element_type=f32)                 # (planes, NB*LP)
    out = acc2 * s2_ref[...] + b2_ref[...]

    # ---- BN2 + residual (f32, straight from x) + ReLU; un-padded store -----
    for nb in range(NB):
        o_ref[nb] = jnp.maximum(out[:, nb * LP:nb * LP + L] + x_ref[nb], 0.0)


def basic_block_forward(x, params, eps=1e-5, compute_dtype=jnp.bfloat16):
    """x: (N, C, L) float32.  params: conv weights + BatchNorm params/stats.

    compute_dtype is the dtype of the MXU operands (weights + im2col slabs);
    accumulation, BatchNorm, residual and ReLU stay in float32.
    """
    N, Cin, L = x.shape
    planes = params["w1"].shape[0]
    assert Cin == planes, "downsample=None requires inplanes == planes"
    f32 = jnp.float32

    is_bf16 = compute_dtype == jnp.bfloat16
    cbytes = 2 if is_bf16 else 4
    SUB = 16 if is_bf16 else 8                   # sublane tile of compute dtype

    LP = ((L + 127) // 128) * 128                # lane-dense internal length
    CS = ((Cin + SUB - 1) // SUB) * SUB          # sublane-aligned channel stride
    W = LP + 2 * PAD

    # ---- chip-aware VMEM budget (v7x has only 64 MiB per TensorCore) -------
    try:
        vmem_phys = int(pltpu.get_tpu_info().vmem_capacity_bytes)
    except Exception:
        vmem_phys = 64 * 1024 * 1024             # conservative: v7x per-core VMEM
    vmem_cap = (vmem_phys * 3) // 4              # ~25% headroom for the compiler

    def est_bytes(nb):
        xin = 2 * nb * Cin * L * 4               # x block (double-buffered)
        outb = 2 * nb * planes * L * 4           # out block (double-buffered)
        wts = 2 * 2 * planes * K * CS * cbytes   # both flat weights (dbl-buffered)
        vecs = 2 * 4 * planes * 4                # folded BN scales / biases
        slabs = 2 * K * CS * nb * LP * cbytes    # im2col scratches
        stage = CS * W * 4                       # staging slab
        acts = 4 * planes * nb * LP * 4          # acc/h/out vreg-spill headroom
        return xin + outb + wts + vecs + slabs + stage + acts

    # Merge samples into the lane axis (~1024 lanes / step), keep >= 2 grid
    # steps when N >= 2 (both v7x cores), shrink NB until it fits in VMEM.
    NB = max(1, min(N, 1024 // LP))
    if N >= 2:
        NB = min(NB, max(1, N // 2))
    while NB > 1 and est_bytes(NB) > vmem_cap:
        NB -= 1
    num_steps = -(-N // NB)
    Npad = num_steps * NB

    # ---- fold BatchNorm (eval mode) into per-channel scale / bias ----------
    def fold_bn(g, be, m, v):
        s = g / jnp.sqrt(v + eps)
        b = be - m * s
        return (s.reshape(-1, 1).astype(f32), b.reshape(-1, 1).astype(f32))

    s1, b1 = fold_bn(params["g1"], params["be1"], params["m1"], params["v1"])
    s2, b2 = fold_bn(params["g2"], params["be2"], params["m2"], params["v2"])

    # Flattened, sublane-aligned weight layout: column index = k*CS + c
    # (zero columns where c >= Cin match the zero pad rows of the slabs).
    def flat_weight(w):
        co, ci, _ = w.shape
        wt = jnp.transpose(w.astype(f32), (0, 2, 1))           # (co, K, ci)
        wt = jnp.pad(wt, ((0, 0), (0, 0), (0, CS - ci)))
        return wt.reshape(co, K * CS).astype(compute_dtype)

    w1m = flat_weight(params["w1"])
    w2m = flat_weight(params["w2"])

    x_in = x.astype(f32)
    if Npad > N:
        x_in = jnp.pad(x_in, ((0, Npad - N), (0, 0), (0, 0)))

    flops = 2 * N * L * K * (planes * Cin + planes * planes)
    bytes_accessed = 4 * (N * Cin * L + N * planes * L) \
        + cbytes * (w1m.size + w2m.size)
    cost = pl.CostEstimate(flops=int(flops), transcendentals=0,
                           bytes_accessed=int(bytes_accessed))

    vmem_limit = int(min(vmem_cap, max(32 * 1024 * 1024, 2 * est_bytes(NB))))

    kernel = functools.partial(basic_block_kernel,
                               L=L, LP=LP, CS=CS, cdtype=compute_dtype)

    grid_spec = pltpu.PrefetchScalarGridSpec(
        num_scalar_prefetch=0,
        grid=(num_steps,),
        in_specs=[
            pl.BlockSpec((NB, Cin, L), lambda b: (b, 0, 0)),      # x (raw)
            pl.BlockSpec((planes, K * CS), lambda b: (0, 0)),     # w1 flat
            pl.BlockSpec((planes, 1), lambda b: (0, 0)),          # s1
            pl.BlockSpec((planes, 1), lambda b: (0, 0)),          # b1
            pl.BlockSpec((planes, K * CS), lambda b: (0, 0)),     # w2 flat
            pl.BlockSpec((planes, 1), lambda b: (0, 0)),          # s2
            pl.BlockSpec((planes, 1), lambda b: (0, 0)),          # b2
        ],
        out_specs=pl.BlockSpec((NB, planes, L), lambda b: (b, 0, 0)),
        scratch_shapes=[
            pltpu.VMEM((CS, W), f32),                   # staging slab
            pltpu.VMEM((K * CS, NB * LP), compute_dtype),  # conv1 im2col slab
            pltpu.VMEM((K * CS, NB * LP), compute_dtype),  # conv2 im2col slab
        ],
    )

    out = pl.pallas_call(
        kernel,
        out_shape=jax.ShapeDtypeStruct((Npad, planes, L), f32),
        grid_spec=grid_spec,
        compiler_params=pltpu.CompilerParams(
            dimension_semantics=("parallel",),
            vmem_limit_bytes=vmem_limit),
        cost_estimate=cost,
    )(x_in, w1m, s1, b1, w2m, s2, b2)

    return out[:N] if Npad > N else out


def reference_forward(x, params, eps=1e-5):
    """Pure-JAX reference (mirrors PyTorch eval-mode forward)."""
    def conv(x, w):
        return jax.lax.conv_general_dilated(
            x, w, window_strides=(1,), padding=[(PAD, PAD)],
            dimension_numbers=("NCH", "OIH", "NCH"))

    def bn(y, g, b, m, v):
        return (y - m[None, :, None]) / jnp.sqrt(v[None, :, None] + eps) \
               * g[None, :, None] + b[None, :, None]

    out = conv(x, params["w1"])
    out = bn(out, params["g1"], params["be1"], params["m1"], params["v1"])
    out = jnp.maximum(out, 0.0)
    # dropout: identity in eval
    out = conv(out, params["w2"])
    out = bn(out, params["g2"], params["be2"], params["m2"], params["v2"])
    out = out + x
    return jnp.maximum(out, 0.0)


if __name__ == "__main__":
    # Small shapes: batch=2, inplanes=planes=4, length=16
    N, C, L = 2, 4, 16
    key = jax.random.PRNGKey(0)
    ks = jax.random.split(key, 8)

    x = jax.random.normal(ks[0], (N, C, L), dtype=jnp.float32)

    params = {
        "w1": 0.1 * jax.random.normal(ks[1], (C, C, K), dtype=jnp.float32),
        "w2": 0.1 * jax.random.normal(ks[2], (C, C, K), dtype=jnp.float32),
        # BatchNorm1d parameters / running stats (eval mode), deterministic:
        "g1": 1.0 + 0.1 * jax.random.normal(ks[3], (C,), dtype=jnp.float32),
        "be1": 0.1 * jax.random.normal(ks[4], (C,), dtype=jnp.float32),
        "m1": 0.05 * jax.random.normal(ks[5], (C,), dtype=jnp.float32),
        "v1": 1.0 + 0.1 * jnp.abs(jax.random.normal(ks[6], (C,), dtype=jnp.float32)),
        "g2": jnp.ones((C,), jnp.float32),
        "be2": jnp.zeros((C,), jnp.float32),
        "m2": jnp.zeros((C,), jnp.float32),
        "v2": jnp.ones((C,), jnp.float32),
    }

    ref = reference_forward(x, params)

    # Exact-math path (f32 MXU operands) — tight tolerance.
    out_f32 = jax.block_until_ready(
        basic_block_forward(x, params, compute_dtype=jnp.float32))
    assert out_f32.shape == (N, C, L)
    assert jnp.allclose(out_f32, ref, atol=1e-4, rtol=1e-4), \
        f"f32 max err {jnp.max(jnp.abs(out_f32 - ref))}"

    # Default mixed-precision path (bf16 MXU operands, f32 accumulation).
    out_bf16 = jax.block_until_ready(basic_block_forward(x, params))
    assert out_bf16.shape == (N, C, L)
    assert jnp.allclose(out_bf16, ref, atol=3e-2, rtol=3e-2), \
        f"bf16 max err {jnp.max(jnp.abs(out_bf16 - ref))}"

    print("KERNEL_OK")
</pallas_src>

<mosaic_0001>
module attributes {stable_mosaic.version = 11 : i64} {
  func.func @basic_block_kernel(%arg0: i32, %arg1: memref<1x4x16xf32, #tpu.memory_space<vmem>>, %arg2: memref<4x56xf32, #tpu.memory_space<vmem>>, %arg3: memref<4x1xf32, #tpu.memory_space<vmem>>, %arg4: memref<4x1xf32, #tpu.memory_space<vmem>>, %arg5: memref<4x56xf32, #tpu.memory_space<vmem>>, %arg6: memref<4x1xf32, #tpu.memory_space<vmem>>, %arg7: memref<4x1xf32, #tpu.memory_space<vmem>>, %arg8: memref<1x4x16xf32, #tpu.memory_space<vmem>>, %arg9: memref<8x134xf32, #tpu.memory_space<vmem>>, %arg10: memref<56x128xf32, #tpu.memory_space<vmem>>, %arg11: memref<56x128xf32, #tpu.memory_space<vmem>>) attributes {dimension_semantics = [#tpu.dimension_semantics<parallel>], iteration_bounds = array<i64: 2>, scalar_prefetch = 0 : i64, scratch_operands = 3 : i64, tpu.core_type = #tpu.core_type<tc>, window_params = [{transform_indices = @transform_0, window_bounds = array<i64: 1, 4, 16>}, {pipeline_mode = #tpu.pipeline_mode<synchronous>, transform_indices = @transform_1, window_bounds = array<i64: 4, 56>}, {pipeline_mode = #tpu.pipeline_mode<synchronous>, transform_indices = @transform_2, window_bounds = array<i64: 4, 1>}, {pipeline_mode = #tpu.pipeline_mode<synchronous>, transform_indices = @transform_3, window_bounds = array<i64: 4, 1>}, {pipeline_mode = #tpu.pipeline_mode<synchronous>, transform_indices = @transform_4, window_bounds = array<i64: 4, 56>}, {pipeline_mode = #tpu.pipeline_mode<synchronous>, transform_indices = @transform_5, window_bounds = array<i64: 4, 1>}, {pipeline_mode = #tpu.pipeline_mode<synchronous>, transform_indices = @transform_6, window_bounds = array<i64: 4, 1>}, {transform_indices = @transform_7, window_bounds = array<i64: 1, 4, 16>}]} {
    %cst = arith.constant 0.000000e+00 : f32
    %0 = vector.broadcast %cst : f32 to vector<8x3xf32>
    %c0 = arith.constant 0 : index
    %c0_0 = arith.constant 0 : index
    %1 = vector.load %arg9[%c0, %c0_0] : memref<8x134xf32, #tpu.memory_space<vmem>>, vector<8x3xf32>
    tpu.vector_store %arg9[%c0, %c0_0], %0 {strides = array<i32>} : memref<8x134xf32, #tpu.memory_space<vmem>>, vector<8x3xf32>,
    %cst_1 = arith.constant 0.000000e+00 : f32
    %2 = vector.broadcast %cst_1 : f32 to vector<8x115xf32>
    %c0_2 = arith.constant 0 : index
    %c19 = arith.constant 19 : index
    %3 = vector.load %arg9[%c0_2, %c19] : memref<8x134xf32, #tpu.memory_space<vmem>>, vector<8x115xf32>
    tpu.vector_store %arg9[%c0_2, %c19], %2 {strides = array<i32>} : memref<8x134xf32, #tpu.memory_space<vmem>>, vector<8x115xf32>,
    %cst_3 = arith.constant 0.000000e+00 : f32
    %4 = vector.broadcast %cst_3 : f32 to vector<4x16xf32>
    %c4 = arith.constant 4 : index
    %c3 = arith.constant 3 : index
    %5 = vector.load %arg9[%c4, %c3] : memref<8x134xf32, #tpu.memory_space<vmem>>, vector<4x16xf32>
    tpu.vector_store %arg9[%c4, %c3], %4 {strides = array<i32>} : memref<8x134xf32, #tpu.memory_space<vmem>>, vector<4x16xf32>,
    %c0_4 = arith.constant 0 : index
    %c0_5 = arith.constant 0 : index
    %c0_6 = arith.constant 0 : index
    %6 = vector.load %arg1[%c0_4, %c0_5, %c0_6] : memref<1x4x16xf32, #tpu.memory_space<vmem>>, vector<1x4x16xf32>
    %7 = vector.shape_cast %6 : vector<1x4x16xf32> to vector<4x16xf32>
    %c0_7 = arith.constant 0 : index
    %c3_8 = arith.constant 3 : index
    %8 = vector.load %arg9[%c0_7, %c3_8] : memref<8x134xf32, #tpu.memory_space<vmem>>, vector<4x16xf32>
    tpu.vector_store %arg9[%c0_7, %c3_8], %7 {strides = array<i32>} : memref<8x134xf32, #tpu.memory_space<vmem>>, vector<4x16xf32>,
    %c0_9 = arith.constant 0 : index
    %c0_10 = arith.constant 0 : index
    %9 = vector.load %arg9[%c0_9, %c0_10] : memref<8x134xf32, #tpu.memory_space<vmem>>, vector<8x134xf32>
    %10 = vector.extract_strided_slice %9 {offsets = [0, 0], sizes = [8, 128], strides = [1, 1]} : vector<8x134xf32> to vector<8x128xf32>
    %c0_11 = arith.constant 0 : index
    %c0_12 = arith.constant 0 : index
    %11 = vector.load %arg10[%c0_11, %c0_12] : memref<56x128xf32, #tpu.memory_space<vmem>>, vector<8x128xf32>
    tpu.vector_store %arg10[%c0_11, %c0_12], %10 {strides = array<i32>} : memref<56x128xf32, #tpu.memory_space<vmem>>, vector<8x128xf32>,
    %12 = vector.extract_strided_slice %9 {offsets = [0, 1], sizes = [8, 128], strides = [1, 1]} : vector<8x134xf32> to vector<8x128xf32>
    %c8 = arith.constant 8 : index
    %c0_13 = arith.constant 0 : index
    %13 = vector.load %arg10[%c8, %c0_13] : memref<56x128xf32, #tpu.memory_space<vmem>>, vector<8x128xf32>
    tpu.vector_store %arg10[%c8, %c0_13], %12 {strides = array<i32>} : memref<56x128xf32, #tpu.memory_space<vmem>>, vector<8x128xf32>,
    %14 = vector.extract_strided_slice %9 {offsets = [0, 2], sizes = [8, 128], strides = [1, 1]} : vector<8x134xf32> to vector<8x128xf32>
    %c16 = arith.constant 16 : index
    %c0_14 = arith.constant 0 : index
    %15 = vector.load %arg10[%c16, %c0_14] : memref<56x128xf32, #tpu.memory_space<vmem>>, vector<8x128xf32>
    tpu.vector_store %arg10[%c16, %c0_14], %14 {strides = array<i32>} : memref<56x128xf32, #tpu.memory_space<vmem>>, vector<8x128xf32>,
    %16 = vector.extract_strided_slice %9 {offsets = [0, 3], sizes = [8, 128], strides = [1, 1]} : vector<8x134xf32> to vector<8x128xf32>
    %c24 = arith.constant 24 : index
    %c0_15 = arith.constant 0 : index
    %17 = vector.load %arg10[%c24, %c0_15] : memref<56x128xf32, #tpu.memory_space<vmem>>, vector<8x128xf32>
    tpu.vector_store %arg10[%c24, %c0_15], %16 {strides = array<i32>} : memref<56x128xf32, #tpu.memory_space<vmem>>, vector<8x128xf32>,
    %18 = vector.extract_strided_slice %9 {offsets = [0, 4], sizes = [8, 128], strides = [1, 1]} : vector<8x134xf32> to vector<8x128xf32>
    %c32 = arith.constant 32 : index
    %c0_16 = arith.constant 0 : index
    %19 = vector.load %arg10[%c32, %c0_16] : memref<56x128xf32, #tpu.memory_space<vmem>>, vector<8x128xf32>
    tpu.vector_store %arg10[%c32, %c0_16], %18 {strides = array<i32>} : memref<56x128xf32, #tpu.memory_space<vmem>>, vector<8x128xf32>,
    %20 = vector.extract_strided_slice %9 {offsets = [0, 5], sizes = [8, 128], strides = [1, 1]} : vector<8x134xf32> to vector<8x128xf32>
    %c40 = arith.constant 40 : index
    %c0_17 = arith.constant 0 : index
    %21 = vector.load %arg10[%c40, %c0_17] : memref<56x128xf32, #tpu.memory_space<vmem>>, vector<8x128xf32>
    tpu.vector_store %arg10[%c40, %c0_17], %20 {strides = array<i32>} : memref<56x128xf32, #tpu.memory_space<vmem>>, vector<8x128xf32>,
    %22 = vector.extract_strided_slice %9 {offsets = [0, 6], sizes = [8, 128], strides = [1, 1]} : vector<8x134xf32> to vector<8x128xf32>
    %c48 = arith.constant 48 : index
    %c0_18 = arith.constant 0 : index
    %23 = vector.load %arg10[%c48, %c0_18] : memref<56x128xf32, #tpu.memory_space<vmem>>, vector<8x128xf32>
    tpu.vector_store %arg10[%c48, %c0_18], %22 {strides = array<i32>} : memref<56x128xf32, #tpu.memory_space<vmem>>, vector<8x128xf32>,
    %c0_19 = arith.constant 0 : index
    %c0_20 = arith.constant 0 : index
    %24 = vector.load %arg2[%c0_19, %c0_20] : memref<4x56xf32, #tpu.memory_space<vmem>>, vector<4x56xf32>
    %c0_21 = arith.constant 0 : index
    %c0_22 = arith.constant 0 : index
    %25 = vector.load %arg10[%c0_21, %c0_22] : memref<56x128xf32, #tpu.memory_space<vmem>>, vector<56x128xf32>
    %cst_23 = arith.constant dense<0.000000e+00> : vector<4x128xf32>
    %26 = tpu.matmul %24, %25, %cst_23 {dimension_numbers = #tpu.dot_dimension_numbers<[1], [0], [0], [1], [0, 0, 1, 1], [], []>} : vector<4x56xf32>, vector<56x128xf32>, vector<4x128xf32> -> vector<4x128xf32>
    %c0_24 = arith.constant 0 : index
    %c0_25 = arith.constant 0 : index
    %27 = vector.load %arg3[%c0_24, %c0_25] : memref<4x1xf32, #tpu.memory_space<vmem>>, vector<4x1xf32>
    %28 = vector.broadcast %27 : vector<4x1xf32> to vector<4x128xf32>
    %29 = arith.mulf %26, %28 : vector<4x128xf32>
    %c0_26 = arith.constant 0 : index
    %c0_27 = arith.constant 0 : index
    %30 = vector.load %arg4[%c0_26, %c0_27] : memref<4x1xf32, #tpu.memory_space<vmem>>, vector<4x1xf32>
    %31 = vector.broadcast %30 : vector<4x1xf32> to vector<4x128xf32>
    %32 = arith.addf %29, %31 : vector<4x128xf32>
    %cst_28 = arith.constant 0.000000e+00 : f32
    %33 = vector.broadcast %cst_28 : f32 to vector<4x128xf32>
    %34 = arith.maximumf %32, %33 : vector<4x128xf32>
    %35 = vector.extract_strided_slice %34 {offsets = [0, 0], sizes = [4, 16], strides = [1, 1]} : vector<4x128xf32> to vector<4x16xf32>
    %c0_29 = arith.constant 0 : index
    %c3_30 = arith.constant 3 : index
    %36 = vector.load %arg9[%c0_29, %c3_30] : memref<8x134xf32, #tpu.memory_space<vmem>>, vector<4x16xf32>
    tpu.vector_store %arg9[%c0_29, %c3_30], %35 {strides = array<i32>} : memref<8x134xf32, #tpu.memory_space<vmem>>, vector<4x16xf32>,
    %c0_31 = arith.constant 0 : index
    %c0_32 = arith.constant 0 : index
    %37 = vector.load %arg9[%c0_31, %c0_32] : memref<8x134xf32, #tpu.memory_space<vmem>>, vector<8x134xf32>
    %38 = vector.extract_strided_slice %37 {offsets = [0, 0], sizes = [8, 128], strides = [1, 1]} : vector<8x134xf32> to vector<8x128xf32>
    %c0_33 = arith.constant 0 : index
    %c0_34 = arith.constant 0 : index
    %39 = vector.load %arg11[%c0_33, %c0_34] : memref<56x128xf32, #tpu.memory_space<vmem>>, vector<8x128xf32>
    tpu.vector_store %arg11[%c0_33, %c0_34], %38 {strides = array<i32>} : memref<56x128xf32, #tpu.memory_space<vmem>>, vector<8x128xf32>,
    %40 = vector.extract_strided_slice %37 {offsets = [0, 1], sizes = [8, 128], strides = [1, 1]} : vector<8x134xf32> to vector<8x128xf32>
    %c8_35 = arith.constant 8 : index
    %c0_36 = arith.constant 0 : index
    %41 = vector.load %arg11[%c8_35, %c0_36] : memref<56x128xf32, #tpu.memory_space<vmem>>, vector<8x128xf32>
    tpu.vector_store %arg11[%c8_35, %c0_36], %40 {strides = array<i32>} : memref<56x128xf32, #tpu.memory_space<vmem>>, vector<8x128xf32>,
    %42 = vector.extract_strided_slice %37 {offsets = [0, 2], sizes = [8, 128], strides = [1, 1]} : vector<8x134xf32> to vector<8x128xf32>
    %c16_37 = arith.constant 16 : index
    %c0_38 = arith.constant 0 : index
    %43 = vector.load %arg11[%c16_37, %c0_38] : memref<56x128xf32, #tpu.memory_space<vmem>>, vector<8x128xf32>
    tpu.vector_store %arg11[%c16_37, %c0_38], %42 {strides = array<i32>} : memref<56x128xf32, #tpu.memory_space<vmem>>, vector<8x128xf32>,
    %44 = vector.extract_strided_slice %37 {offsets = [0, 3], sizes = [8, 128], strides = [1, 1]} : vector<8x134xf32> to vector<8x128xf32>
    %c24_39 = arith.constant 24 : index
    %c0_40 = arith.constant 0 : index
    %45 = vector.load %arg11[%c24_39, %c0_40] : memref<56x128xf32, #tpu.memory_space<vmem>>, vector<8x128xf32>
    tpu.vector_store %arg11[%c24_39, %c0_40], %44 {strides = array<i32>} : memref<56x128xf32, #tpu.memory_space<vmem>>, vector<8x128xf32>,
    %46 = vector.extract_strided_slice %37 {offsets = [0, 4], sizes = [8, 128], strides = [1, 1]} : vector<8x134xf32> to vector<8x128xf32>
    %c32_41 = arith.constant 32 : index
    %c0_42 = arith.constant 0 : index
    %47 = vector.load %arg11[%c32_41, %c0_42] : memref<56x128xf32, #tpu.memory_space<vmem>>, vector<8x128xf32>
    tpu.vector_store %arg11[%c32_41, %c0_42], %46 {strides = array<i32>} : memref<56x128xf32, #tpu.memory_space<vmem>>, vector<8x128xf32>,
    %48 = vector.extract_strided_slice %37 {offsets = [0, 5], sizes = [8, 128], strides = [1, 1]} : vector<8x134xf32> to vector<8x128xf32>
    %c40_43 = arith.constant 40 : index
    %c0_44 = arith.constant 0 : index
    %49 = vector.load %arg11[%c40_43, %c0_44] : memref<56x128xf32, #tpu.memory_space<vmem>>, vector<8x128xf32>
    tpu.vector_store %arg11[%c40_43, %c0_44], %48 {strides = array<i32>} : memref<56x128xf32, #tpu.memory_space<vmem>>, vector<8x128xf32>,
    %50 = vector.extract_strided_slice %37 {offsets = [0, 6], sizes = [8, 128], strides = [1, 1]} : vector<8x134xf32> to vector<8x128xf32>
    %c48_45 = arith.constant 48 : index
    %c0_46 = arith.constant 0 : index
    %51 = vector.load %arg11[%c48_45, %c0_46] : memref<56x128xf32, #tpu.memory_space<vmem>>, vector<8x128xf32>
    tpu.vector_store %arg11[%c48_45, %c0_46], %50 {strides = array<i32>} : memref<56x128xf32, #tpu.memory_space<vmem>>, vector<8x128xf32>,
    %c0_47 = arith.constant 0 : index
    %c0_48 = arith.constant 0 : index
    %52 = vector.load %arg5[%c0_47, %c0_48] : memref<4x56xf32, #tpu.memory_space<vmem>>, vector<4x56xf32>
    %c0_49 = arith.constant 0 : index
    %c0_50 = arith.constant 0 : index
    %53 = vector.load %arg11[%c0_49, %c0_50] : memref<56x128xf32, #tpu.memory_space<vmem>>, vector<56x128xf32>
    %cst_51 = arith.constant dense<0.000000e+00> : vector<4x128xf32>
    %54 = tpu.matmul %52, %53, %cst_51 {dimension_numbers = #tpu.dot_dimension_numbers<[1], [0], [0], [1], [0, 0, 1, 1], [], []>} : vector<4x56xf32>, vector<56x128xf32>, vector<4x128xf32> -> vector<4x128xf32>
    %c0_52 = arith.constant 0 : index
    %c0_53 = arith.constant 0 : index
    %55 = vector.load %arg6[%c0_52, %c0_53] : memref<4x1xf32, #tpu.memory_space<vmem>>, vector<4x1xf32>
    %56 = vector.broadcast %55 : vector<4x1xf32> to vector<4x128xf32>
    %57 = arith.mulf %54, %56 : vector<4x128xf32>
    %c0_54 = arith.constant 0 : index
    %c0_55 = arith.constant 0 : index
    %58 = vector.load %arg7[%c0_54, %c0_55] : memref<4x1xf32, #tpu.memory_space<vmem>>, vector<4x1xf32>
    %59 = vector.broadcast %58 : vector<4x1xf32> to vector<4x128xf32>
    %60 = arith.addf %57, %59 : vector<4x128xf32>
    %61 = vector.extract_strided_slice %60 {offsets = [0, 0], sizes = [4, 16], strides = [1, 1]} : vector<4x128xf32> to vector<4x16xf32>
    %c0_56 = arith.constant 0 : index
    %c0_57 = arith.constant 0 : index
    %c0_58 = arith.constant 0 : index
    %62 = vector.load %arg1[%c0_56, %c0_57, %c0_58] : memref<1x4x16xf32, #tpu.memory_space<vmem>>, vector<1x4x16xf32>
    %63 = vector.shape_cast %62 : vector<1x4x16xf32> to vector<4x16xf32>
    %64 = arith.addf %61, %63 : vector<4x16xf32>
    %cst_59 = arith.constant 0.000000e+00 : f32
    %65 = vector.broadcast %cst_59 : f32 to vector<4x16xf32>
    %66 = arith.maximumf %64, %65 : vector<4x16xf32>
    %c0_60 = arith.constant 0 : index
    %c0_61 = arith.constant 0 : index
    %c0_62 = arith.constant 0 : index
    %67 = vector.load %arg8[%c0_60, %c0_61, %c0_62] : memref<1x4x16xf32, #tpu.memory_space<vmem>>, vector<1x4x16xf32>
    %68 = vector.shape_cast %67 : vector<1x4x16xf32> to vector<4x16xf32>
    %69 = vector.shape_cast %66 : vector<4x16xf32> to vector<1x4x16xf32>
    tpu.vector_store %arg8[%c0_60, %c0_61, %c0_62], %69 {strides = array<i32>} : memref<1x4x16xf32, #tpu.memory_space<vmem>>, vector<1x4x16xf32>,
    return
  }
  func.func @transform_0(%arg0: i32) -> (i32, i32, i32) {
    %c0_i32 = arith.constant 0 : i32
    %c0_i32_0 = arith.constant 0 : i32
    %c0_i32_1 = arith.constant 0 : i32
    return %arg0, %c0_i32, %c0_i32_0 : i32, i32, i32
  }
  func.func @transform_1(%arg0: i32) -> (i32, i32) {
    %c0_i32 = arith.constant 0 : i32
    %c0_i32_0 = arith.constant 0 : i32
    %c0_i32_1 = arith.constant 0 : i32
    return %c0_i32, %c0_i32_0 : i32, i32
  }
  func.func @transform_2(%arg0: i32) -> (i32, i32) {
    %c0_i32 = arith.constant 0 : i32
    %c0_i32_0 = arith.constant 0 : i32
    %c0_i32_1 = arith.constant 0 : i32
    return %c0_i32, %c0_i32_0 : i32, i32
  }
  func.func @transform_3(%arg0: i32) -> (i32, i32) {
    %c0_i32 = arith.constant 0 : i32
    %c0_i32_0 = arith.constant 0 : i32
    %c0_i32_1 = arith.constant 0 : i32
    return %c0_i32, %c0_i32_0 : i32, i32
  }
  func.func @transform_4(%arg0: i32) -> (i32, i32) {
    %c0_i32 = arith.constant 0 : i32
    %c0_i32_0 = arith.constant 0 : i32
    %c0_i32_1 = arith.constant 0 : i32
    return %c0_i32, %c0_i32_0 : i32, i32
  }
  func.func @transform_5(%arg0: i32) -> (i32, i32) {
    %c0_i32 = arith.constant 0 : i32
    %c0_i32_0 = arith.constant 0 : i32
    %c0_i32_1 = arith.constant 0 : i32
    return %c0_i32, %c0_i32_0 : i32, i32
  }
  func.func @transform_6(%arg0: i32) -> (i32, i32) {
    %c0_i32 = arith.constant 0 : i32
    %c0_i32_0 = arith.constant 0 : i32
    %c0_i32_1 = arith.constant 0 : i32
    return %c0_i32, %c0_i32_0 : i32, i32
  }
  func.func @transform_7(%arg0: i32) -> (i32, i32, i32) {
    %c0_i32 = arith.constant 0 : i32
    %c0_i32_0 = arith.constant 0 : i32
    %c0_i32_1 = arith.constant 0 : i32
    return %arg0, %c0_i32, %c0_i32_0 : i32, i32, i32
  }
}

</mosaic_0001>

<llo_original>
// kernel: tpu_custom_call.1
$region0: #{tpu_custom_call.1}
  #allocation0 [shape = 'u32[]', space=smem, size = 0x4, offset = 0x4, fixed_abs, tag = 'smem constant byte address 0x4 - core index']
  #allocation1 [shape = 'u32[72,128]{1,0:T(1,128)}', space=vmem, size = 0x9000, scoped, tag = 'internal scratch']
  #allocation2 [shape = 'f32[8,134]{1,0:T(8,128)}', space=vmem, size = 0x2000, scoped, tag = 'scratch operand']
  #allocation3 [shape = 'f32[56,128]{1,0:T(8,128)}', space=vmem, size = 0x7000, scoped, tag = 'scratch operand']
  #allocation4 [shape = 'f32[56,128]{1,0:T(8,128)}', space=vmem, size = 0x7000, scoped, tag = 'scratch operand']
  %s0 = inlined_call_operand.vmem [shape: f32[2,4,16], index: 0, kind: input, shape index: {}]
  %s1 = inlined_call_operand.vmem [shape: f32[4,56], index: 1, kind: input, shape index: {}]
  %s2 = inlined_call_operand.vmem [shape: f32[4,1], index: 2, kind: input, shape index: {}]
  %s3 = inlined_call_operand.vmem [shape: f32[4,1], index: 3, kind: input, shape index: {}]
  %s4 = inlined_call_operand.vmem [shape: f32[4,56], index: 4, kind: input, shape index: {}]
  %s5 = inlined_call_operand.vmem [shape: f32[4,1], index: 5, kind: input, shape index: {}]
  %s6 = inlined_call_operand.vmem [shape: f32[4,1], index: 6, kind: input, shape index: {}]
  %s7 = inlined_call_operand.hbm [shape: f32[2,4,16], index: 7, kind: output, shape index: {}]
  %s8 = sld [smem:[#allocation0]]
  $region61: #{tpu_custom_call.1} parent=0
    _
  %s10 = ssub.s32 1, %s8
  %s11 = scalar_select 0, %s10, %s8
  $region1: #{tpu_custom_call.1} parent=0
    #allocation5 [shape = 'u8[4096]{0}', space=vmem, size = 0x1000, scoped, tag = 'output window, operand 0']
    #allocation6 [shape = 's32[2]{0}', space=sflag, size = 0x8, scoped, tag = 'scoped memory for tpu_custom_call.1']
    %12 = vsyncpa [#allocation6], 0
    %s13 = scalar_lea.sflag [#allocation6], 1
    %14 = vsyncpa %s13, 0
    loop: start=0, step=1, limit=4
    $region2: #{tpu_custom_call.1} parent=1 // loop_pre_header
      _
    $region3: #{tpu_custom_call.1} parent=1 // loop_header
      %s16 = sphi 0, %s20
      %p17 = scmp.ge.s32.totalorder %s16, 4
      %s26 = sphi 0, %s28
      %s29 = sphi 0, %s26
      %s30 = sphi 0, %s29
      %s46 = sphi 0, %s30
      %s50 = sphi 0, %s50
      %s52 = sphi 0, %s50
      %s53 = sphi 0, %s52
      %s67 = sphi 0, %s53
      %s71 = sphi 0, %s71
      %s73 = sphi 0, %s71
      %s74 = sphi 0, %s73
      %s88 = sphi 0, %s74
      %s92 = sphi 0, %s92
      %s94 = sphi 0, %s92
      %s95 = sphi 0, %s94
      %s109 = sphi 0, %s95
      %s113 = sphi 0, %s113
      %s115 = sphi 0, %s113
      %s116 = sphi 0, %s115
      %s130 = sphi 0, %s116
      %s134 = sphi 0, %s134
      %s136 = sphi 0, %s134
      %s137 = sphi 0, %s136
      %s151 = sphi 0, %s137
      %s155 = sphi 0, %s155
      %s157 = sphi 0, %s155
      %s158 = sphi 0, %s157
      %s172 = sphi 0, %s158
      %s178 = sphi 0, %s180
      %s181 = sphi 0, %s178
      %s182 = sphi 0, %s181
      %s198 = sphi 0, %s182
    $region4: #{tpu_custom_call.1} parent=1 // loop_header_branch
      %19 = sbr.rel (%p17) target = $region8
    $region5: #{tpu_custom_call.1} parent=1 // loop_body
      %s21 = ssub.s32 %s16, 1
      %s22 = ssub.s32 %s16, 2
      %s23 = sadd.s32 %s16, 1
      %s24 = ssub.s32 %s16, %s23
      %p25 = scmp.eq.s32.totalorder %s24, 0
      %s27 = sadd.s32 %s26, 1
      %s28 = scalar_select %p25, %s26, %s27
      %p31 = pneg %p25
      %p32 = scmp.eq.s32.totalorder %s16, 1
      %p33 = por %p31, %p32
      %p34 = scmp.ne.s32.totalorder %s26, %s29
      %p35 = scmp.eq.s32.totalorder %s16, 0
      %p36 = por %p34, %p35
      %p37 = scmp.ne.s32.totalorder %s26, %s29
      %p38 = scmp.eq.s32.totalorder %s21, 1
      %p39 = por %p37, %p38
      %p40 = scmp.ne.s32.totalorder %s29, %s30
      %p41 = scmp.eq.s32.totalorder %s21, 0
      %p42 = por %p40, %p41
      %p43 = scmp.ne.s32.totalorder %s29, %s30
      %p44 = scmp.eq.s32.totalorder %s22, 1
      %p45 = por %p43, %p44
      %p47 = scmp.ne.s32.totalorder %s30, %s46
      %p48 = scmp.eq.s32.totalorder %s22, 0
      %p49 = por %p47, %p48
      %s51 = sadd.s32 %s50, 1
      %p54 = scmp.eq.s32.totalorder %s16, 1
      %p55 = scmp.ne.s32.totalorder %s50, %s52
      %p56 = scmp.eq.s32.totalorder %s16, 0
      %p57 = por %p55, %p56
      %p58 = scmp.ne.s32.totalorder %s50, %s52
      %p59 = scmp.eq.s32.totalorder %s21, 1
      %p60 = por %p58, %p59
      %p61 = scmp.ne.s32.totalorder %s52, %s53
      %p62 = scmp.eq.s32.totalorder %s21, 0
      %p63 = por %p61, %p62
      %p64 = scmp.ne.s32.totalorder %s52, %s53
      %p65 = scmp.eq.s32.totalorder %s22, 1
      %p66 = por %p64, %p65
      %p68 = scmp.ne.s32.totalorder %s53, %s67
      %p69 = scmp.eq.s32.totalorder %s22, 0
      %p70 = por %p68, %p69
      %s72 = sadd.s32 %s71, 1
      %p75 = scmp.eq.s32.totalorder %s16, 1
      %p76 = scmp.ne.s32.totalorder %s71, %s73
      %p77 = scmp.eq.s32.totalorder %s16, 0
      %p78 = por %p76, %p77
      %p79 = scmp.ne.s32.totalorder %s71, %s73
      %p80 = scmp.eq.s32.totalorder %s21, 1
      %p81 = por %p79, %p80
      %p82 = scmp.ne.s32.totalorder %s73, %s74
      %p83 = scmp.eq.s32.totalorder %s21, 0
      %p84 = por %p82, %p83
      %p85 = scmp.ne.s32.totalorder %s73, %s74
      %p86 = scmp.eq.s32.totalorder %s22, 1
      %p87 = por %p85, %p86
      %p89 = scmp.ne.s32.totalorder %s74, %s88
      %p90 = scmp.eq.s32.totalorder %s22, 0
      %p91 = por %p89, %p90
      %s93 = sadd.s32 %s92, 1
      %p96 = scmp.eq.s32.totalorder %s16, 1
      %p97 = scmp.ne.s32.totalorder %s92, %s94
      %p98 = scmp.eq.s32.totalorder %s16, 0
      %p99 = por %p97, %p98
      %p100 = scmp.ne.s32.totalorder %s92, %s94
      %p101 = scmp.eq.s32.totalorder %s21, 1
      %p102 = por %p100, %p101
      %p103 = scmp.ne.s32.totalorder %s94, %s95
      %p104 = scmp.eq.s32.totalorder %s21, 0
      %p105 = por %p103, %p104
      %p106 = scmp.ne.s32.totalorder %s94, %s95
      %p107 = scmp.eq.s32.totalorder %s22, 1
      %p108 = por %p106, %p107
      %p110 = scmp.ne.s32.totalorder %s95, %s109
      %p111 = scmp.eq.s32.totalorder %s22, 0
      %p112 = por %p110, %p111
      %s114 = sadd.s32 %s113, 1
      %p117 = scmp.eq.s32.totalorder %s16, 1
      %p118 = scmp.ne.s32.totalorder %s113, %s115
      %p119 = scmp.eq.s32.totalorder %s16, 0
      %p120 = por %p118, %p119
      %p121 = scmp.ne.s32.totalorder %s113, %s115
      %p122 = scmp.eq.s32.totalorder %s21, 1
      %p123 = por %p121, %p122
      %p124 = scmp.ne.s32.totalorder %s115, %s116
      %p125 = scmp.eq.s32.totalorder %s21, 0
      %p126 = por %p124, %p125
      %p127 = scmp.ne.s32.totalorder %s115, %s116
      %p128 = scmp.eq.s32.totalorder %s22, 1
      %p129 = por %p127, %p128
      %p131 = scmp.ne.s32.totalorder %s116, %s130
      %p132 = scmp.eq.s32.totalorder %s22, 0
      %p133 = por %p131, %p132
      %s135 = sadd.s32 %s134, 1
      %p138 = scmp.eq.s32.totalorder %s16, 1
      %p139 = scmp.ne.s32.totalorder %s134, %s136
      %p140 = scmp.eq.s32.totalorder %s16, 0
      %p141 = por %p139, %p140
      %p142 = scmp.ne.s32.totalorder %s134, %s136
      %p143 = scmp.eq.s32.totalorder %s21, 1
      %p144 = por %p142, %p143
      %p145 = scmp.ne.s32.totalorder %s136, %s137
      %p146 = scmp.eq.s32.totalorder %s21, 0
      %p147 = por %p145, %p146
      %p148 = scmp.ne.s32.totalorder %s136, %s137
      %p149 = scmp.eq.s32.totalorder %s22, 1
      %p150 = por %p148, %p149
      %p152 = scmp.ne.s32.totalorder %s137, %s151
      %p153 = scmp.eq.s32.totalorder %s22, 0
      %p154 = por %p152, %p153
      %s156 = sadd.s32 %s155, 1
      %p159 = scmp.eq.s32.totalorder %s16, 1
      %p160 = scmp.ne.s32.totalorder %s155, %s157
      %p161 = scmp.eq.s32.totalorder %s16, 0
      %p162 = por %p160, %p161
      %p163 = scmp.ne.s32.totalorder %s155, %s157
      %p164 = scmp.eq.s32.totalorder %s21, 1
      %p165 = por %p163, %p164
      %p166 = scmp.ne.s32.totalorder %s157, %s158
      %p167 = scmp.eq.s32.totalorder %s21, 0
      %p168 = por %p166, %p167
      %p169 = scmp.ne.s32.totalorder %s157, %s158
      %p170 = scmp.eq.s32.totalorder %s22, 1
      %p171 = por %p169, %p170
      %p173 = scmp.ne.s32.totalorder %s158, %s172
      %p174 = scmp.eq.s32.totalorder %s22, 0
      %p175 = por %p173, %p174
      %s176 = ssub.s32 %s16, %s23
      %p177 = scmp.eq.s32.totalorder %s176, 0
      %s179 = sadd.s32 %s178, 1
      %s180 = scalar_select %p177, %s178, %s179
      %p183 = pneg %p177
      %p184 = scmp.eq.s32.totalorder %s16, 1
      %p185 = por %p183, %p184
      %p186 = scmp.ne.s32.totalorder %s178, %s181
      %p187 = scmp.eq.s32.totalorder %s16, 0
      %p188 = por %p186, %p187
      %p189 = scmp.ne.s32.totalorder %s178, %s181
      %p190 = scmp.eq.s32.totalorder %s21, 1
      %p191 = por %p189, %p190
      %p192 = scmp.ne.s32.totalorder %s181, %s182
      %p193 = scmp.eq.s32.totalorder %s21, 0
      %p194 = por %p192, %p193
      %p195 = scmp.ne.s32.totalorder %s181, %s182
      %p196 = scmp.eq.s32.totalorder %s22, 1
      %p197 = por %p195, %p196
      %p199 = scmp.ne.s32.totalorder %s182, %s198
      %p200 = scmp.eq.s32.totalorder %s22, 0
      %p201 = por %p199, %p200
      %p202 = scmp.le.s32.totalorder 1, %s16
      %p203 = scmp.lt.s32.totalorder %s16, 3
      %p204 = pnand %p202, %p203
      %p205 = pneg %p204
      // Predicated region
      $region9: #{tpu_custom_call.1} parent=5 // pred_check
        _
      $region10: #{tpu_custom_call.1} parent=5 // pred_check_branch
        %207 = sbr.rel (%p204) target = $region12
      $region11: #{tpu_custom_call.1} parent=5 // pred_region
        %s208 = ssub.s32 %s16, 1
        // Predicated region
        $region13: #{tpu_custom_call.1} parent=11 // pred_check
          %p209 = pneg %p63
        $region14: #{tpu_custom_call.1} parent=11 // pred_check_branch
          %211 = sbr.rel (%p209) target = $region16
        $region15: #{tpu_custom_call.1} parent=11 // pred_region
          _
        $region16: #{tpu_custom_call.1} parent=11 // pred_fallthru
          _
        // Predicated region
        $region17: #{tpu_custom_call.1} parent=11 // pred_check
          %p212 = pneg %p84
        $region18: #{tpu_custom_call.1} parent=11 // pred_check_branch
          %214 = sbr.rel (%p212) target = $region20
        $region19: #{tpu_custom_call.1} parent=11 // pred_region
          _
        $region20: #{tpu_custom_call.1} parent=11 // pred_fallthru
          _
        // Predicated region
        $region21: #{tpu_custom_call.1} parent=11 // pred_check
          %p215 = pneg %p105
        $region22: #{tpu_custom_call.1} parent=11 // pred_check_branch
          %217 = sbr.rel (%p215) target = $region24
        $region23: #{tpu_custom_call.1} parent=11 // pred_region
          _
        $region24: #{tpu_custom_call.1} parent=11 // pred_fallthru
          _
        // Predicated region
        $region25: #{tpu_custom_call.1} parent=11 // pred_check
          %p218 = pneg %p126
        $region26: #{tpu_custom_call.1} parent=11 // pred_check_branch
          %220 = sbr.rel (%p218) target = $region28
        $region27: #{tpu_custom_call.1} parent=11 // pred_region
          _
        $region28: #{tpu_custom_call.1} parent=11 // pred_fallthru
          _
        // Predicated region
        $region29: #{tpu_custom_call.1} parent=11 // pred_check
          %p221 = pneg %p147
        $region30: #{tpu_custom_call.1} parent=11 // pred_check_branch
          %223 = sbr.rel (%p221) target = $region32
        $region31: #{tpu_custom_call.1} parent=11 // pred_region
          _
        $region32: #{tpu_custom_call.1} parent=11 // pred_fallthru
          _
        // Predicated region
        $region33: #{tpu_custom_call.1} parent=11 // pred_check
          %p224 = pneg %p168
        $region34: #{tpu_custom_call.1} parent=11 // pred_check_branch
          %226 = sbr.rel (%p224) target = $region36
        $region35: #{tpu_custom_call.1} parent=11 // pred_region
          _
        $region36: #{tpu_custom_call.1} parent=11 // pred_fallthru
          _
      $region12: #{tpu_custom_call.1} parent=5 // pred_fallthru
        _
      %p227 = scmp.lt.s32.totalorder %s16, 2
      // Predicated region
      $region37: #{tpu_custom_call.1} parent=5 // pred_check
        %p228 = pneg %p227
      $region38: #{tpu_custom_call.1} parent=5 // pred_check_branch
        %230 = sbr.rel (%p228) target = $region40
      $region39: #{tpu_custom_call.1} parent=5 // pred_region
        // Predicated region
        $region41: #{tpu_custom_call.1} parent=39 // pred_check
          %p231 = pneg %p36
        $region42: #{tpu_custom_call.1} parent=39 // pred_check_branch
          %233 = sbr.rel (%p231) target = $region44
        $region43: #{tpu_custom_call.1} parent=39 // pred_region
          %p234 = scmp.lt.s32.totalorder %s16, 1
          %s235 = scalar_select %p234, %s16, 1
          %s236 = smul.addr %s235, 4
          %s237 = scalar_lea.vmem %s0, %s236
        $region44: #{tpu_custom_call.1} parent=39 // pred_fallthru
          _
      $region40: #{tpu_custom_call.1} parent=5 // pred_fallthru
        _
      %p238 = scmp.le.s32.totalorder 1, %s16
      %p239 = scmp.lt.s32.totalorder %s16, 3
      %p240 = pnand %p238, %p239
      %p241 = pneg %p240
      // Predicated region
      $region45: #{tpu_custom_call.1} parent=5 // pred_check
        _
      $region46: #{tpu_custom_call.1} parent=5 // pred_check_branch
        %243 = sbr.rel (%p240) target = $region48
      $region47: #{tpu_custom_call.1} parent=5 // pred_region
        %s244 = ssub.s32 %s16, 1
        %p245 = scmp.lt.s32.totalorder %s21, 1
        %s246 = scalar_select %p245, %s21, 1
        %s247 = smul.addr %s246, 4
        %s248 = scalar_lea.vmem %s0, %s247
        %p249 = pneg %p42
        %p250 = pneg %p39
        %p251 = pneg %p63
        %p252 = pneg %p60
        %p253 = pneg %p84
        %p254 = pneg %p81
        %p255 = pneg %p105
        %p256 = pneg %p102
        %p257 = pneg %p126
        %p258 = pneg %p123
        %p259 = pneg %p147
        %p260 = pneg %p144
        %p261 = pneg %p168
        %p262 = pneg %p165
        %p263 = pneg %p194
        %p264 = pneg %p191
        %s265 = sand.u32 %s181, 1
        %s266 = scalar_lea.sflag [#allocation6], %s265
        %s267 = sand.u32 %s181, 1
        %s268 = smul.addr %s267, 4
        %s269 = scalar_lea.vmem [#allocation5], %s268
        %p270 = scmp.lt.s32.totalorder %s21, 1
        %s271 = scalar_select %p270, %s21, 1
        %s272 = smul.addr %s271, 4
        %s273 = scalar_lea.vmem %s0, %s272
        %vm274 = vcmask 23552
        %275 = vst.msk [vmem:[#allocation2] sm:$0xff] %vm274, 0.0
        %vm276 = vcmask 1047704
        %277 = vst.msk [vmem:[#allocation2] sm:$0xff] %vm276, 0.0
        %vm278 = vcmask 48128
        %279 = vst.msk [vmem:[#allocation2 + $0x8] sm:$0xff] %vm278, 0.0
        %vm280 = vcmask 154652
        %281 = vst.msk [vmem:[#allocation2] sm:$0xf0] %vm280, 0.0
        %v282 = vld [vmem:[%s273] sm:$0xf]
        %284 = vrot.lane.b32.xlu0 %v282, 3
        %v285 = vpop.permute.xlu0 %284
        %vm287 = vcmask 150552
        %288 = vst.msk [vmem:[#allocation2] sm:$0xf] %vm287, %v285
        %v289 = vld [vmem:[#allocation2] sm:$0xff]
        %v290 = vld [vmem:[#allocation2 + $0x8] sm:$0xff]
        %291 = vst [vmem:[#allocation3] sm:$0xff] %v289
        %294 = vrot.lane.b32.xlu0 %v289, 127
        %v295 = vpop.permute.xlu0 %294
        %296 = vrot.lane.b32.xlu0 %v290, 127
        %v297 = vpop.permute.xlu0 %296
        %vm298 = vcmask 1039360
        %v299 = vsel %vm298, %v295, %v297
        %301 = vst [vmem:[#allocation3 + $0x8] sm:$0xff] %v299
        %302 = vrot.lane.b32.xlu0 %v289, 126
        %v303 = vpop.permute.xlu0 %302
        %304 = vrot.lane.b32.xlu0 %v290, 126
        %v305 = vpop.permute.xlu0 %304
        %vm306 = vcmask 1031168
        %v307 = vsel %vm306, %v303, %v305
        %309 = vst [vmem:[#allocation3 + $0x10] sm:$0xff] %v307
        %310 = vrot.lane.b32.xlu0 %v289, 125
        %v311 = vpop.permute.xlu0 %310
        %312 = vrot.lane.b32.xlu0 %v290, 125
        %v313 = vpop.permute.xlu0 %312
        %vm314 = vcmask 1022976
        %v315 = vsel %vm314, %v311, %v313
        %317 = vst [vmem:[#allocation3 + $0x18] sm:$0xff] %v315
        %318 = vrot.lane.b32.xlu0 %v289, 124
        %v319 = vpop.permute.xlu0 %318
        %320 = vrot.lane.b32.xlu0 %v290, 124
        %v321 = vpop.permute.xlu0 %320
        %vm322 = vcmask 1014784
        %v323 = vsel %vm322, %v319, %v321
        %325 = vst [vmem:[#allocation3 + $0x20] sm:$0xff] %v323
        %326 = vrot.lane.b32.xlu0 %v289, 123
        %v327 = vpop.permute.xlu0 %326
        %328 = vrot.lane.b32.xlu0 %v290, 123
        %v329 = vpop.permute.xlu0 %328
        %vm330 = vcmask 1006592
        %v331 = vsel %vm330, %v327, %v329
        %333 = vst [vmem:[#allocation3 + $0x28] sm:$0xff] %v331
        %334 = vrot.lane.b32.xlu0 %v289, 122
        %v335 = vpop.permute.xlu0 %334
        %336 = vrot.lane.b32.xlu0 %v290, 122
        %v337 = vpop.permute.xlu0 %336
        %vm338 = vcmask 998400
        %v339 = vsel %vm338, %v335, %v337
        %341 = vst [vmem:[#allocation3 + $0x30] sm:$0xff] %v339
        %v342 = vld [vmem:[%s1] sm:$0xf]
        %v343 = vld [vmem:[#allocation3] sm:$0xff]
        %v344 = vld [vmem:[#allocation3 + $0x8] sm:$0xff]
        %v345 = vld [vmem:[#allocation3 + $0x10] sm:$0xff]
        %v346 = vld [vmem:[#allocation3 + $0x18] sm:$0xff]
        %v347 = vld [vmem:[#allocation3 + $0x20] sm:$0xff]
        %v348 = vld [vmem:[#allocation3 + $0x28] sm:$0xff]
        %v349 = vld [vmem:[#allocation3 + $0x30] sm:$0xff]
        %vm350 = vcmask 457728
        %v352 = vsel %vm350, %v342, 0
        %354 = vmatpush.msra.mxu0 0.0
        %355 = vmatpush.msra.mxu0 0.0
        %356 = vmatpush.msra.mxu0 0.0
        %357 = vmatpush.msra.mxu0 0.0
        %358 = vmatpush.msra.mxu0 0.0
        %359 = vmatpush.msra.mxu0 0.0
        %360 = vmatpush.msra.mxu0 0.0
        %361 = vmatpush.msra.mxu0 0.0
        %362 = vmatpush.msra.mxu0 0.0
        %363 = vmatpush.msra.mxu0 %v349
        %364 = vmatpush.msra.mxu0 %v348
        %365 = vmatpush.msra.mxu0 %v347
        %366 = vmatpush.msra.mxu0 %v346
        %367 = vmatpush.msra.mxu0 %v345
        %368 = vmatpush.msra.mxu0 %v344
        %369 = vmatpush.msra.mxu0 %v343
        %370 = vmatmul.f32.gmra.mxu0 %v352
        %v371 = vpop.f32.mrf.mxu0
        %v372 = vadd.f32 0.0, %v371
        %373 = vdwg.mxu0
        %v374 = vld [vmem:[%s2] sm:$0xf]
        %376 = vset.pattern.permute.xlu0 0
        %377 = vperm.xlu0 %376, %v374
        %v378 = vpop.permute.xlu0 %377
        %v380 = vmul.f32 %v372, %v378
        %v381 = vld [vmem:[%s3] sm:$0xf]
        %383 = vset.pattern.permute.xlu0 0
        %384 = vperm.xlu0 %383, %v381
        %v385 = vpop.permute.xlu0 %384
        %v387 = vadd.f32 %v380, %v385
        %v388 = vmax.f32 %v387, 0.0
        %390 = vrot.lane.b32.xlu0 %v388, 3
        %v391 = vpop.permute.xlu0 %390
        %393 = vst.msk [vmem:[#allocation2] sm:$0xf] %vm287, %v391
        %v394 = vld [vmem:[#allocation2] sm:$0xff]
        %v395 = vld [vmem:[#allocation2 + $0x8] sm:$0xff]
        %396 = vst [vmem:[#allocation4] sm:$0xff] %v394
        %399 = vrot.lane.b32.xlu0 %v394, 127
        %v400 = vpop.permute.xlu0 %399
        %401 = vrot.lane.b32.xlu0 %v395, 127
        %v402 = vpop.permute.xlu0 %401
        %v403 = vsel %vm298, %v400, %v402
        %405 = vst [vmem:[#allocation4 + $0x8] sm:$0xff] %v403
        %406 = vrot.lane.b32.xlu0 %v394, 126
        %v407 = vpop.permute.xlu0 %406
        %408 = vrot.lane.b32.xlu0 %v395, 126
        %v409 = vpop.permute.xlu0 %408
        %v410 = vsel %vm306, %v407, %v409
        %412 = vst [vmem:[#allocation4 + $0x10] sm:$0xff] %v410
        %413 = vrot.lane.b32.xlu0 %v394, 125
        %v414 = vpop.permute.xlu0 %413
        %415 = vrot.lane.b32.xlu0 %v395, 125
        %v416 = vpop.permute.xlu0 %415
        %v417 = vsel %vm314, %v414, %v416
        %419 = vst [vmem:[#allocation4 + $0x18] sm:$0xff] %v417
        %420 = vrot.lane.b32.xlu0 %v394, 124
        %v421 = vpop.permute.xlu0 %420
        %422 = vrot.lane.b32.xlu0 %v395, 124
        %v423 = vpop.permute.xlu0 %422
        %v424 = vsel %vm322, %v421, %v423
        %426 = vst [vmem:[#allocation4 + $0x20] sm:$0xff] %v424
        %427 = vrot.lane.b32.xlu0 %v394, 123
        %v428 = vpop.permute.xlu0 %427
        %429 = vrot.lane.b32.xlu0 %v395, 123
        %v430 = vpop.permute.xlu0 %429
        %v431 = vsel %vm330, %v428, %v430
        %433 = vst [vmem:[#allocation4 + $0x28] sm:$0xff] %v431
        %434 = vrot.lane.b32.xlu0 %v394, 122
        %v435 = vpop.permute.xlu0 %434
        %436 = vrot.lane.b32.xlu0 %v395, 122
        %v437 = vpop.permute.xlu0 %436
        %v438 = vsel %vm338, %v435, %v437
        %440 = vst [vmem:[#allocation4 + $0x30] sm:$0xff] %v438
        %v441 = vld [vmem:[%s4] sm:$0xf]
        %v442 = vld [vmem:[#allocation4] sm:$0xff]
        %v443 = vld [vmem:[#allocation4 + $0x8] sm:$0xff]
        %v444 = vld [vmem:[#allocation4 + $0x10] sm:$0xff]
        %v445 = vld [vmem:[#allocation4 + $0x18] sm:$0xff]
        %v446 = vld [vmem:[#allocation4 + $0x20] sm:$0xff]
        %v447 = vld [vmem:[#allocation4 + $0x28] sm:$0xff]
        %v448 = vld [vmem:[#allocation4 + $0x30] sm:$0xff]
        %v450 = vsel %vm350, %v441, 0
        %452 = vmatpush.msra.mxu0 0.0
        %453 = vmatpush.msra.mxu0 0.0
        %454 = vmatpush.msra.mxu0 0.0
        %455 = vmatpush.msra.mxu0 0.0
        %456 = vmatpush.msra.mxu0 0.0
        %457 = vmatpush.msra.mxu0 0.0
        %458 = vmatpush.msra.mxu0 0.0
        %459 = vmatpush.msra.mxu0 0.0
        %460 = vmatpush.msra.mxu0 0.0
        %461 = vmatpush.msra.mxu0 %v448
        %462 = vmatpush.msra.mxu0 %v447
        %463 = vmatpush.msra.mxu0 %v446
        %464 = vmatpush.msra.mxu0 %v445
        %465 = vmatpush.msra.mxu0 %v444
        %466 = vmatpush.msra.mxu0 %v443
        %467 = vmatpush.msra.mxu0 %v442
        %468 = vmatmul.f32.gmra.mxu0 %v450
        %v469 = vpop.f32.mrf.mxu0
        %v470 = vadd.f32 0.0, %v469
        %471 = vdwg.mxu0
        %v472 = vld [vmem:[%s5] sm:$0xf]
        %474 = vset.pattern.permute.xlu0 0
        %475 = vperm.xlu0 %474, %v472
        %v476 = vpop.permute.xlu0 %475
        %v478 = vmul.f32 %v470, %v476
        %v479 = vld [vmem:[%s6] sm:$0xf]
        %481 = vset.pattern.permute.xlu0 0
        %482 = vperm.xlu0 %481, %v479
        %v483 = vpop.permute.xlu0 %482
        %v485 = vadd.f32 %v478, %v483
        %v486 = vld [vmem:[%s273] sm:$0xf]
        %v487 = vadd.f32 %v485, %v486
        %v488 = vmax.f32 %v487, 0.0
        %vm489 = vcmask 125952
        %490 = vst.msk [vmem:[%s269] sm:$0xf] %vm489, %v488
        %s491 = sand.u32 %s181, 1
        %s492 = scalar_lea.sflag [#allocation6], %s491
        %s493 = sand.u32 %s181, 1
        %s494 = smul.addr %s493, 4
        %s495 = scalar_lea.vmem [#allocation5], %s494
        // Predicated region
        $region49: #{tpu_custom_call.1} parent=47 // pred_check
          %p496 = pneg %p191
        $region50: #{tpu_custom_call.1} parent=47 // pred_check_branch
          %498 = sbr.rel (%p496) target = $region52
        $region51: #{tpu_custom_call.1} parent=47 // pred_region
          %500 = vsyncadd %s492, 0
          %s501 = smul.addr %s21, 4
          %s502 = scalar_lea.hbm %s7, %s501
          %s504 = sshll.u32 %s495, 4
          %s505 = int_to_ptr.vmem [resolvable:$true] %s504
          %s506 = sshll.u32 %s502, 4
          %s507 = int_to_ptr.hbm [resolvable:$true] %s506
          %509 = dma.vmem_to_hbm [thread:$0]  %s505, 64, %s507, %s492
        $region52: #{tpu_custom_call.1} parent=47 // pred_fallthru
          _
      $region48: #{tpu_custom_call.1} parent=5 // pred_fallthru
        _
      %p510 = scmp.le.s32.totalorder 2, %s16
      // Predicated region
      $region53: #{tpu_custom_call.1} parent=5 // pred_check
        %p511 = pneg %p510
      $region54: #{tpu_custom_call.1} parent=5 // pred_check_branch
        %513 = sbr.rel (%p511) target = $region56
      $region55: #{tpu_custom_call.1} parent=5 // pred_region
        %s514 = ssub.s32 %s16, 2
        // Predicated region
        $region57: #{tpu_custom_call.1} parent=55 // pred_check
          %p515 = pneg %p197
        $region58: #{tpu_custom_call.1} parent=55 // pred_check_branch
          %517 = sbr.rel (%p515) target = $region60
        $region59: #{tpu_custom_call.1} parent=55 // pred_region
          %s518 = sand.u32 %s182, 1
          %s519 = scalar_lea.sflag [#allocation6], %s518
          %s520 = sand.u32 %s182, 1
          %s521 = smul.addr %s520, 4
          %s522 = scalar_lea.vmem [#allocation5], %s521
          %524 = dma.done %s519, 64
        $region60: #{tpu_custom_call.1} parent=55 // pred_fallthru
          _
      $region56: #{tpu_custom_call.1} parent=5 // pred_fallthru
        _
    $region6: #{tpu_custom_call.1} parent=1 // loop_footer
      %s20 = sadd.s32 1, %s16
    $region7: #{tpu_custom_call.1} parent=1 // loop_footer_branch
      %15 = sbr.rel target = $region3
    $region8: #{tpu_custom_call.1} parent=1 // loop_exit
      _
    %525 = vsyncpa [#allocation6], 1
    %s526 = scalar_lea.sflag [#allocation6], 1
    %527 = vsyncpa %s526, 1

</llo_original>
